<compile_context>
chip_gen: v7x
topology: tpu7x:2x2x1
jax: 0.10.0
libtpu: 0.0.40
codegen_flags: <defaults>
</compile_context>

<pallas_src>
import functools

import jax
import jax.numpy as jnp
from jax.experimental import pallas as pl
from jax.experimental.pallas import tpu as pltpu


def _cdiv(a, b):
    return -(-a // b)


# ---------------------------------------------------------------------------
# Fused kernel: per-tile normalization (+ optional (8, Fp) stats accumulation).
# ---------------------------------------------------------------------------
def _fused_kernel(x_ref, mean_ref, var_ref, y_ref, *stat_refs, epsilon, unnorm,
                  norm_only, compute_stats):
    t = pl.program_id(1)                        # tile index within this core

    x = x_ref[...].astype(jnp.float32)          # (TN, Fp)
    mean = mean_ref[...]                        # (1, Fp) f32, broadcast over rows
    var = var_ref[...]                          # (1, Fp) f32

    d = x - mean                                # reused for output and stats
    inv_std = jax.lax.rsqrt(var + epsilon)

    if unnorm:
        y = jnp.sqrt(var + epsilon) * jnp.clip(x, -5.0, 5.0) + mean
    elif norm_only:
        y = x * inv_std
    else:
        y = jnp.clip(d * inv_std, -5.0, 5.0)
    y_ref[...] = y.astype(y_ref.dtype)

    if compute_stats:
        sd_ref, sd2_ref = stat_refs
        # (TN, Fp) -> (TN//8, 8, Fp): split exactly at sublane-tile boundaries,
        # so the reduce over axis 0 is just VPU vreg adds (no XLU reduction).
        tn = d.shape[0]
        d3 = d.reshape(tn // 8, 8, d.shape[-1])
        pd = jnp.sum(d3, axis=0)                # (8, Fp)  partial sum of d
        pd2 = jnp.sum(d3 * d3, axis=0)          # (8, Fp)  partial sum of d^2

        @pl.when(t == 0)
        def _():
            sd_ref[...] = jnp.zeros_like(sd_ref)
            sd2_ref[...] = jnp.zeros_like(sd2_ref)

        sd_ref[...] += pd
        sd2_ref[...] += pd2


@functools.partial(jax.jit,
                   static_argnames=("epsilon", "unnorm", "norm_only",
                                    "compute_stats"))
def _fused_forward(x2d, mean_f, var_f, *, epsilon, unnorm, norm_only,
                   compute_stats):
    """Returns (y, sum_d, sum_d2) where d = x - running_mean (per feature).

    When compute_stats=False, sum_d / sum_d2 are returned as None.
    """
    n, f = x2d.shape

    # ---- lane packing: make the last (lane) dim a full 128 when possible ----
    if f < 128 and 128 % f == 0:
        k = 128 // f
    else:
        k = 1
    fp = k * f
    n_rows = _cdiv(n, k)                        # packed rows needed

    # ---- tiling: ~2 MiB of x per grid step, 2-core-parallel leading axis ----
    num_cores = 2
    tn_target = max(8, ((2 * 1024 * 1024) // (fp * 4)) // 8 * 8)
    rows_per_core = _cdiv(n_rows, num_cores)
    tn = max(8, min(tn_target, _cdiv(rows_per_core, 8) * 8))
    t_per_core = _cdiv(n_rows, num_cores * tn)
    n_rows_pad = num_cores * t_per_core * tn
    n_pad = n_rows_pad * k

    mean2 = mean_f.reshape(1, f).astype(jnp.float32)
    var2 = var_f.reshape(1, f).astype(jnp.float32)
    mean_t = jnp.tile(mean2, (1, k))            # (1, Fp)
    var_t = jnp.tile(var2, (1, k))              # (1, Fp)

    xp = x2d
    if n_pad > n:
        # pad rows with running_mean so d == 0 there (no effect on the stats)
        pad = jnp.broadcast_to(mean2.astype(x2d.dtype), (n_pad - n, f))
        xp = jnp.concatenate([xp, pad], axis=0)
    xp = xp.reshape(n_rows_pad, fp)

    kernel = functools.partial(_fused_kernel, epsilon=float(epsilon),
                               unnorm=bool(unnorm), norm_only=bool(norm_only),
                               compute_stats=bool(compute_stats))

    out_shape = [jax.ShapeDtypeStruct((n_rows_pad, fp), x2d.dtype)]
    out_specs = [pl.BlockSpec((tn, fp), lambda c, t: (c * t_per_core + t, 0))]
    if compute_stats:
        out_shape += [
            jax.ShapeDtypeStruct((num_cores * 8, fp), jnp.float32),
            jax.ShapeDtypeStruct((num_cores * 8, fp), jnp.float32),
        ]
        out_specs += [
            pl.BlockSpec((8, fp), lambda c, t: (c, 0)),   # resident over t
            pl.BlockSpec((8, fp), lambda c, t: (c, 0)),   # resident over t
        ]

    results = pl.pallas_call(
        kernel,
        out_shape=tuple(out_shape),
        grid_spec=pltpu.PrefetchScalarGridSpec(
            num_scalar_prefetch=0,
            grid=(num_cores, t_per_core),
            in_specs=[
                pl.BlockSpec((tn, fp), lambda c, t: (c * t_per_core + t, 0)),
                pl.BlockSpec((1, fp), lambda c, t: (0, 0)),
                pl.BlockSpec((1, fp), lambda c, t: (0, 0)),
            ],
            out_specs=out_specs,
        ),
        compiler_params=pltpu.CompilerParams(
            dimension_semantics=("parallel", "arbitrary"),
            vmem_limit_bytes=32 * 1024 * 1024,
        ),
    )(xp, mean_t, var_t)

    if compute_stats:
        y_p, sd, sd2 = results
    else:
        y_p = results[0] if isinstance(results, (tuple, list)) else results
        sd = sd2 = None

    y = y_p.reshape(n_pad, f)[:n]

    if not compute_stats:
        return y, None, None

    # tiny finalize: cross-core + cross-sublane + unpack, all on (k*F,)-sized data
    sum_d = sd.sum(axis=0).reshape(k, f).sum(axis=0)       # (F,)
    sum_d2 = sd2.sum(axis=0).reshape(k, f).sum(axis=0)     # (F,)
    return y, sum_d, sum_d2


# ---------------------------------------------------------------------------
# Module wrapper (running-state glue in plain JAX)
# ---------------------------------------------------------------------------
class RunningMeanStd:
    """JAX/Pallas port of phc.utils.running_mean_std.RunningMeanStd.

    per_channel=False path only; buffers kept in float32 (torch uses float64).
    """

    def __init__(self, insize, epsilon=1e-5, per_channel=False, norm_only=False):
        assert not per_channel, "per_channel path not implemented"
        # TODO(synk): per_channel=True (axis=[0,2,(3)]) and freeze_partial not wired.
        self.insize = tuple(insize)
        self.mean_size = self.insize[0]
        self.epsilon = float(epsilon)
        self.norm_only = bool(norm_only)
        self.per_channel = False
        self.running_mean = jnp.zeros((self.mean_size,), dtype=jnp.float32)
        self.running_var = jnp.ones((self.mean_size,), dtype=jnp.float32)
        self.count = jnp.ones((), dtype=jnp.float32)
        self.training = True
        self.forzen = False

    def train(self):
        self.training = True
        return self

    def eval(self):
        self.training = False
        return self

    def freeze(self):
        self.forzen = True

    def unfreeze(self):
        self.forzen = False

    @staticmethod
    def _update_mean_var_count_from_moments(mean, var, count,
                                            batch_mean, batch_var, batch_count):
        delta = batch_mean - mean
        tot_count = count + batch_count
        new_mean = mean + delta * batch_count / tot_count
        m_a = var * count
        m_b = batch_var * batch_count
        m2 = m_a + m_b + delta ** 2 * count * batch_count / tot_count
        new_var = m2 / tot_count
        return new_mean, new_var, tot_count

    def forward(self, x, unnorm=False):
        assert x.ndim == 2 and x.shape[1] == self.mean_size
        update_stats = self.training and not self.forzen
        y, sum_d, sum_d2 = _fused_forward(
            x, self.running_mean, self.running_var,
            epsilon=self.epsilon, unnorm=bool(unnorm),
            norm_only=self.norm_only, compute_stats=update_stats)

        if update_stats:
            n = x.shape[0]
            # d was centered on running_mean inside the kernel:
            #   batch_mean = rm + sum(d)/n,  sum((x-mean)^2) = sum(d^2) - sum(d)^2/n
            batch_mean = self.running_mean + sum_d / n
            # unbiased (ddof=1) variance to match torch.var; n == 1 gives nan
            # just like the PyTorch reference.
            batch_var = jnp.maximum(
                (sum_d2 - (sum_d * sum_d) / n) / (n - 1), 0.0)
            new_mean, new_var, new_count = self._update_mean_var_count_from_moments(
                self.running_mean, self.running_var, self.count,
                batch_mean, batch_var, jnp.float32(n))
            self.running_mean = new_mean
            self.running_var = new_var
            self.count = new_count
        return y

    __call__ = forward


# ---------------------------------------------------------------------------
# Self-check against a pure-JAX (f32) reference of the torch semantics
# ---------------------------------------------------------------------------
def _reference_step(x, rm, rv, cnt, eps):
    y = jnp.clip((x - rm) / jnp.sqrt(rv + eps), -5.0, 5.0)
    n = x.shape[0]
    bm = jnp.mean(x, axis=0)
    bv = jnp.var(x, axis=0, ddof=1)
    delta = bm - rm
    tot = cnt + n
    new_mean = rm + delta * n / tot
    m2 = rv * cnt + bv * n + delta ** 2 * cnt * n / tot
    new_var = m2 / tot
    return y, new_mean, new_var, tot


if __name__ == "__main__":
    key = jax.random.PRNGKey(0)
    batch, feat = 50, 32          # 50 is not a multiple of the packed tile -> exercises padding
    rms = RunningMeanStd(insize=(feat,), epsilon=1e-5)

    rm_ref = jnp.zeros((feat,), jnp.float32)
    rv_ref = jnp.ones((feat,), jnp.float32)
    cnt_ref = jnp.float32(1.0)

    # training-mode steps (stats update each step; step>0 pads with nonzero running_mean)
    for step in range(3):
        key, sub = jax.random.split(key)
        x = (jax.random.normal(sub, (batch, feat), dtype=jnp.float32)
             * (1.5 + step) + 0.3 * step)
        y = rms(x)
        jax.block_until_ready(y)

        y_ref, rm_ref, rv_ref, cnt_ref = _reference_step(
            x, rm_ref, rv_ref, cnt_ref, rms.epsilon)
        assert jnp.allclose(y, y_ref, atol=1e-5, rtol=1e-5), f"y mismatch step {step}"
        assert jnp.allclose(rms.running_mean, rm_ref, atol=1e-4, rtol=1e-4), \
            f"running_mean mismatch step {step}"
        assert jnp.allclose(rms.running_var, rv_ref, atol=1e-4, rtol=1e-4), \
            f"running_var mismatch step {step}"
        assert jnp.allclose(rms.count, cnt_ref), f"count mismatch step {step}"

    # eval-mode normalize (no stat update; exercises the stats-free kernel variant)
    rms.eval()
    key, sub = jax.random.split(key)
    x_eval = jax.random.normal(sub, (batch, feat), dtype=jnp.float32) * 3.0 - 1.0
    y_eval = rms(x_eval)
    jax.block_until_ready(y_eval)
    y_eval_ref = jnp.clip((x_eval - rm_ref) / jnp.sqrt(rv_ref + rms.epsilon), -5.0, 5.0)
    assert jnp.allclose(y_eval, y_eval_ref, atol=1e-5, rtol=1e-5), "eval y mismatch"
    assert jnp.allclose(rms.running_mean, rm_ref), "eval modified running_mean"

    # unnorm path
    y_un = rms(x_eval, unnorm=True)
    jax.block_until_ready(y_un)
    y_un_ref = (jnp.sqrt(rv_ref + rms.epsilon) * jnp.clip(x_eval, -5.0, 5.0) + rm_ref)
    assert jnp.allclose(y_un, y_un_ref, atol=1e-5, rtol=1e-5), "unnorm y mismatch"

    print("KERNEL_OK")
</pallas_src>

<mosaic_0001>
module attributes {stable_mosaic.version = 11 : i64} {
  func.func @_fused_kernel(%arg0: i32, %arg1: i32, %arg2: memref<8x128xf32, #tpu.memory_space<vmem>>, %arg3: memref<1x128xf32, #tpu.memory_space<vmem>>, %arg4: memref<1x128xf32, #tpu.memory_space<vmem>>, %arg5: memref<8x128xf32, #tpu.memory_space<vmem>>, %arg6: memref<8x128xf32, #tpu.memory_space<vmem>>, %arg7: memref<8x128xf32, #tpu.memory_space<vmem>>) attributes {dimension_semantics = [#tpu.dimension_semantics<parallel>, #tpu.dimension_semantics<arbitrary>], iteration_bounds = array<i64: 2, 1>, scalar_prefetch = 0 : i64, scratch_operands = 0 : i64, tpu.core_type = #tpu.core_type<tc>, window_params = [{transform_indices = @transform_0, window_bounds = array<i64: 8, 128>}, {pipeline_mode = #tpu.pipeline_mode<synchronous>, transform_indices = @transform_1, window_bounds = array<i64: 1, 128>}, {pipeline_mode = #tpu.pipeline_mode<synchronous>, transform_indices = @transform_2, window_bounds = array<i64: 1, 128>}, {transform_indices = @transform_3, window_bounds = array<i64: 8, 128>}, {transform_indices = @transform_4, window_bounds = array<i64: 8, 128>}, {transform_indices = @transform_5, window_bounds = array<i64: 8, 128>}]} {
    %c0 = arith.constant 0 : index
    %c0_0 = arith.constant 0 : index
    %0 = vector.load %arg2[%c0, %c0_0] : memref<8x128xf32, #tpu.memory_space<vmem>>, vector<8x128xf32>
    %c0_1 = arith.constant 0 : index
    %c0_2 = arith.constant 0 : index
    %1 = vector.load %arg3[%c0_1, %c0_2] : memref<1x128xf32, #tpu.memory_space<vmem>>, vector<1x128xf32>
    %c0_3 = arith.constant 0 : index
    %c0_4 = arith.constant 0 : index
    %2 = vector.load %arg4[%c0_3, %c0_4] : memref<1x128xf32, #tpu.memory_space<vmem>>, vector<1x128xf32>
    %3 = vector.broadcast %1 : vector<1x128xf32> to vector<8x128xf32>
    %4 = arith.subf %0, %3 : vector<8x128xf32>
    %cst = arith.constant 9.99999974E-6 : f32
    %5 = vector.broadcast %cst : f32 to vector<1x128xf32>
    %6 = arith.addf %2, %5 : vector<1x128xf32>
    %7 = math.rsqrt %6 : vector<1x128xf32>
    %8 = vector.broadcast %7 : vector<1x128xf32> to vector<8x128xf32>
    %9 = arith.mulf %4, %8 : vector<8x128xf32>
    %cst_5 = arith.constant -5.000000e+00 : f32
    %cst_6 = arith.constant 5.000000e+00 : f32
    %10 = vector.broadcast %cst_5 : f32 to vector<8x128xf32>
    %11 = arith.maximumf %10, %9 : vector<8x128xf32>
    %12 = vector.broadcast %cst_6 : f32 to vector<8x128xf32>
    %13 = arith.minimumf %12, %11 : vector<8x128xf32>
    %c0_7 = arith.constant 0 : index
    %c0_8 = arith.constant 0 : index
    %14 = vector.load %arg5[%c0_7, %c0_8] : memref<8x128xf32, #tpu.memory_space<vmem>>, vector<8x128xf32>
    tpu.vector_store %arg5[%c0_7, %c0_8], %13 {strides = array<i32>} : memref<8x128xf32, #tpu.memory_space<vmem>>, vector<8x128xf32>,
    %15 = vector.shape_cast %4 : vector<8x128xf32> to vector<1x8x128xf32>
    %cst_9 = arith.constant dense<0.000000e+00> : vector<8x128xf32>
    %16 = vector.multi_reduction <add>, %15, %cst_9 [0] : vector<1x8x128xf32> to vector<8x128xf32>
    %17 = arith.mulf %15, %15 : vector<1x8x128xf32>
    %cst_10 = arith.constant dense<0.000000e+00> : vector<8x128xf32>
    %18 = vector.multi_reduction <add>, %17, %cst_10 [0] : vector<1x8x128xf32> to vector<8x128xf32>
    %c0_i32 = arith.constant 0 : i32
    %19 = arith.cmpi eq, %arg1, %c0_i32 : i32
    %20 = arith.extui %19 : i1 to i32
    %c0_i32_11 = arith.constant 0 : i32
    %21 = arith.cmpi ne, %20, %c0_i32_11 : i32
    scf.if %21 {
      %cst_20 = arith.constant 0.000000e+00 : f32
      %28 = vector.broadcast %cst_20 : f32 to vector<8x128xf32>
      %c0_21 = arith.constant 0 : index
      %c0_22 = arith.constant 0 : index
      %29 = vector.load %arg6[%c0_21, %c0_22] : memref<8x128xf32, #tpu.memory_space<vmem>>, vector<8x128xf32>
      tpu.vector_store %arg6[%c0_21, %c0_22], %28 {strides = array<i32>} : memref<8x128xf32, #tpu.memory_space<vmem>>, vector<8x128xf32>,
      %cst_23 = arith.constant 0.000000e+00 : f32
      %30 = vector.broadcast %cst_23 : f32 to vector<8x128xf32>
      %c0_24 = arith.constant 0 : index
      %c0_25 = arith.constant 0 : index
      %31 = vector.load %arg7[%c0_24, %c0_25] : memref<8x128xf32, #tpu.memory_space<vmem>>, vector<8x128xf32>
      tpu.vector_store %arg7[%c0_24, %c0_25], %30 {strides = array<i32>} : memref<8x128xf32, #tpu.memory_space<vmem>>, vector<8x128xf32>,
    } else {
    }
    %c0_12 = arith.constant 0 : index
    %c0_13 = arith.constant 0 : index
    %22 = vector.load %arg6[%c0_12, %c0_13] : memref<8x128xf32, #tpu.memory_space<vmem>>, vector<8x128xf32>
    %23 = arith.addf %22, %16 : vector<8x128xf32>
    %c0_14 = arith.constant 0 : index
    %c0_15 = arith.constant 0 : index
    %24 = vector.load %arg6[%c0_14, %c0_15] : memref<8x128xf32, #tpu.memory_space<vmem>>, vector<8x128xf32>
    tpu.vector_store %arg6[%c0_14, %c0_15], %23 {strides = array<i32>} : memref<8x128xf32, #tpu.memory_space<vmem>>, vector<8x128xf32>,
    %c0_16 = arith.constant 0 : index
    %c0_17 = arith.constant 0 : index
    %25 = vector.load %arg7[%c0_16, %c0_17] : memref<8x128xf32, #tpu.memory_space<vmem>>, vector<8x128xf32>
    %26 = arith.addf %25, %18 : vector<8x128xf32>
    %c0_18 = arith.constant 0 : index
    %c0_19 = arith.constant 0 : index
    %27 = vector.load %arg7[%c0_18, %c0_19] : memref<8x128xf32, #tpu.memory_space<vmem>>, vector<8x128xf32>
    tpu.vector_store %arg7[%c0_18, %c0_19], %26 {strides = array<i32>} : memref<8x128xf32, #tpu.memory_space<vmem>>, vector<8x128xf32>,
    return
  }
  func.func @transform_0(%arg0: i32, %arg1: i32) -> (i32, i32) {
    %c1_i32 = arith.constant 1 : i32
    %0 = arith.muli %arg0, %c1_i32 : i32
    %1 = arith.addi %0, %arg1 : i32
    %c0_i32 = arith.constant 0 : i32
    %c0_i32_0 = arith.constant 0 : i32
    return %1, %c0_i32 : i32, i32
  }
  func.func @transform_1(%arg0: i32, %arg1: i32) -> (i32, i32) {
    %c0_i32 = arith.constant 0 : i32
    %c0_i32_0 = arith.constant 0 : i32
    %c0_i32_1 = arith.constant 0 : i32
    return %c0_i32, %c0_i32_0 : i32, i32
  }
  func.func @transform_2(%arg0: i32, %arg1: i32) -> (i32, i32) {
    %c0_i32 = arith.constant 0 : i32
    %c0_i32_0 = arith.constant 0 : i32
    %c0_i32_1 = arith.constant 0 : i32
    return %c0_i32, %c0_i32_0 : i32, i32
  }
  func.func @transform_3(%arg0: i32, %arg1: i32) -> (i32, i32) {
    %c1_i32 = arith.constant 1 : i32
    %0 = arith.muli %arg0, %c1_i32 : i32
    %1 = arith.addi %0, %arg1 : i32
    %c0_i32 = arith.constant 0 : i32
    %c0_i32_0 = arith.constant 0 : i32
    return %1, %c0_i32 : i32, i32
  }
  func.func @transform_4(%arg0: i32, %arg1: i32) -> (i32, i32) {
    %c0_i32 = arith.constant 0 : i32
    %c0_i32_0 = arith.constant 0 : i32
    return %arg0, %c0_i32 : i32, i32
  }
  func.func @transform_5(%arg0: i32, %arg1: i32) -> (i32, i32) {
    %c0_i32 = arith.constant 0 : i32
    %c0_i32_0 = arith.constant 0 : i32
    return %arg0, %c0_i32 : i32, i32
  }
}

</mosaic_0001>

<llo_original>
// kernel: _fused_forward.1
$region0: #{_fused_forward.1}
  #allocation0 [shape = 'u32[]', space=smem, size = 0x4, offset = 0x4, fixed_abs, tag = 'smem constant byte address 0x4 - core index']
  #allocation1 [shape = 'u32[144,128]{1,0:T(1,128)}', space=vmem, size = 0x12000, scoped, tag = 'internal scratch']
  %s0 = inlined_call_operand.vmem [shape: f32[16,128], index: 0, kind: input, shape index: {}]
  %s1 = inlined_call_operand.vmem [shape: f32[1,128], index: 1, kind: input, shape index: {}]
  %s2 = inlined_call_operand.vmem [shape: f32[1,128], index: 2, kind: input, shape index: {}]
  %s3 = inlined_call_operand.vmem [shape: f32[16,128], index: 3, kind: output, shape index: {0}]
  %s4 = inlined_call_operand.vmem [shape: f32[16,128], index: 4, kind: output, shape index: {1}]
  %s5 = inlined_call_operand.vmem [shape: f32[16,128], index: 5, kind: output, shape index: {2}]
  %6 = xla_tuple %s3, %s4, %s5
  %s7 = sld [smem:[#allocation0]]
  $region65: #{_fused_forward.1} parent=0
    _
  %s9 = ssub.s32 1, %s7
  %s10 = scalar_select 0, %s9, %s7
  loop: start=0, step=1, limit=4
  $region2: #{_fused_forward.1} parent=0 // loop_pre_header
    _
  $region3: #{_fused_forward.1} parent=0 // loop_header
    %s12 = sphi 0, %s16
    %p13 = scmp.ge.s32.totalorder %s12, 4
    %s19 = sphi 0, %s31
    %s20 = sphi 0, %s27
    %s21 = sphi 0, %s19
    %s22 = sphi 0, %s20
    %s23 = sphi 0, %s21
    %s24 = sphi 0, %s22
    %s36 = sphi 0, %s38
    %s39 = sphi 0, %s36
    %s40 = sphi 0, %s39
    %s56 = sphi 0, %s40
    %s60 = sphi 0, %s60
    %s62 = sphi 0, %s60
    %s63 = sphi 0, %s62
    %s77 = sphi 0, %s63
    %s81 = sphi 0, %s81
    %s83 = sphi 0, %s81
    %s84 = sphi 0, %s83
    %s98 = sphi 0, %s84
    %s106 = sphi 0, %s108
    %s109 = sphi 0, %s106
    %s110 = sphi 0, %s109
    %s126 = sphi 0, %s110
    %s132 = sphi 0, %s134
    %s135 = sphi 0, %s132
    %s136 = sphi 0, %s135
    %s152 = sphi 0, %s136
    %s158 = sphi 0, %s160
    %s161 = sphi 0, %s158
    %s162 = sphi 0, %s161
    %s178 = sphi 0, %s162
  $region4: #{_fused_forward.1} parent=0 // loop_header_branch
    %15 = sbr.rel (%p13) target = $region8
  $region5: #{_fused_forward.1} parent=0 // loop_body
    %s17 = ssub.s32 %s12, 1
    %s18 = ssub.s32 %s12, 2
    %s25 = sadd.s32 1, %s20
    %p26 = scmp.ge.s32.totalorder %s25, 1
    %s27 = scalar_select %p26, 0, %s25
    %s28 = sadd.s32 1, %s19
    %s29 = scalar_select %p26, %s28, %s19
    %p30 = scmp.ge.s32.totalorder %s29, 2
    %s31 = scalar_select %p30, 0, %s29
    %s32 = sadd.s32 %s19, %s20
    %s33 = sadd.s32 %s31, %s27
    %s34 = ssub.s32 %s32, %s33
    %p35 = scmp.eq.s32.totalorder %s34, 0
    %s37 = sadd.s32 %s36, 1
    %s38 = scalar_select %p35, %s36, %s37
    %p41 = pneg %p35
    %p42 = scmp.eq.s32.totalorder %s12, 1
    %p43 = por %p41, %p42
    %p44 = scmp.ne.s32.totalorder %s36, %s39
    %p45 = scmp.eq.s32.totalorder %s12, 0
    %p46 = por %p44, %p45
    %p47 = scmp.ne.s32.totalorder %s36, %s39
    %p48 = scmp.eq.s32.totalorder %s17, 1
    %p49 = por %p47, %p48
    %p50 = scmp.ne.s32.totalorder %s39, %s40
    %p51 = scmp.eq.s32.totalorder %s17, 0
    %p52 = por %p50, %p51
    %p53 = scmp.ne.s32.totalorder %s39, %s40
    %p54 = scmp.eq.s32.totalorder %s18, 1
    %p55 = por %p53, %p54
    %p57 = scmp.ne.s32.totalorder %s40, %s56
    %p58 = scmp.eq.s32.totalorder %s18, 0
    %p59 = por %p57, %p58
    %s61 = sadd.s32 %s60, 1
    %p64 = scmp.eq.s32.totalorder %s12, 1
    %p65 = scmp.ne.s32.totalorder %s60, %s62
    %p66 = scmp.eq.s32.totalorder %s12, 0
    %p67 = por %p65, %p66
    %p68 = scmp.ne.s32.totalorder %s60, %s62
    %p69 = scmp.eq.s32.totalorder %s17, 1
    %p70 = por %p68, %p69
    %p71 = scmp.ne.s32.totalorder %s62, %s63
    %p72 = scmp.eq.s32.totalorder %s17, 0
    %p73 = por %p71, %p72
    %p74 = scmp.ne.s32.totalorder %s62, %s63
    %p75 = scmp.eq.s32.totalorder %s18, 1
    %p76 = por %p74, %p75
    %p78 = scmp.ne.s32.totalorder %s63, %s77
    %p79 = scmp.eq.s32.totalorder %s18, 0
    %p80 = por %p78, %p79
    %s82 = sadd.s32 %s81, 1
    %p85 = scmp.eq.s32.totalorder %s12, 1
    %p86 = scmp.ne.s32.totalorder %s81, %s83
    %p87 = scmp.eq.s32.totalorder %s12, 0
    %p88 = por %p86, %p87
    %p89 = scmp.ne.s32.totalorder %s81, %s83
    %p90 = scmp.eq.s32.totalorder %s17, 1
    %p91 = por %p89, %p90
    %p92 = scmp.ne.s32.totalorder %s83, %s84
    %p93 = scmp.eq.s32.totalorder %s17, 0
    %p94 = por %p92, %p93
    %p95 = scmp.ne.s32.totalorder %s83, %s84
    %p96 = scmp.eq.s32.totalorder %s18, 1
    %p97 = por %p95, %p96
    %p99 = scmp.ne.s32.totalorder %s84, %s98
    %p100 = scmp.eq.s32.totalorder %s18, 0
    %p101 = por %p99, %p100
    %s102 = sadd.s32 %s19, %s20
    %s103 = sadd.s32 %s31, %s27
    %s104 = ssub.s32 %s102, %s103
    %p105 = scmp.eq.s32.totalorder %s104, 0
    %s107 = sadd.s32 %s106, 1
    %s108 = scalar_select %p105, %s106, %s107
    %p111 = pneg %p105
    %p112 = scmp.eq.s32.totalorder %s12, 1
    %p113 = por %p111, %p112
    %p114 = scmp.ne.s32.totalorder %s106, %s109
    %p115 = scmp.eq.s32.totalorder %s12, 0
    %p116 = por %p114, %p115
    %p117 = scmp.ne.s32.totalorder %s106, %s109
    %p118 = scmp.eq.s32.totalorder %s17, 1
    %p119 = por %p117, %p118
    %p120 = scmp.ne.s32.totalorder %s109, %s110
    %p121 = scmp.eq.s32.totalorder %s17, 0
    %p122 = por %p120, %p121
    %p123 = scmp.ne.s32.totalorder %s109, %s110
    %p124 = scmp.eq.s32.totalorder %s18, 1
    %p125 = por %p123, %p124
    %p127 = scmp.ne.s32.totalorder %s110, %s126
    %p128 = scmp.eq.s32.totalorder %s18, 0
    %p129 = por %p127, %p128
    %s130 = ssub.s32 %s19, %s31
    %p131 = scmp.eq.s32.totalorder %s130, 0
    %s133 = sadd.s32 %s132, 1
    %s134 = scalar_select %p131, %s132, %s133
    %p137 = pneg %p131
    %p138 = scmp.eq.s32.totalorder %s12, 1
    %p139 = por %p137, %p138
    %p140 = scmp.ne.s32.totalorder %s132, %s135
    %p141 = scmp.eq.s32.totalorder %s12, 0
    %p142 = por %p140, %p141
    %p143 = scmp.ne.s32.totalorder %s132, %s135
    %p144 = scmp.eq.s32.totalorder %s17, 1
    %p145 = por %p143, %p144
    %p146 = scmp.ne.s32.totalorder %s135, %s136
    %p147 = scmp.eq.s32.totalorder %s17, 0
    %p148 = por %p146, %p147
    %p149 = scmp.ne.s32.totalorder %s135, %s136
    %p150 = scmp.eq.s32.totalorder %s18, 1
    %p151 = por %p149, %p150
    %p153 = scmp.ne.s32.totalorder %s136, %s152
    %p154 = scmp.eq.s32.totalorder %s18, 0
    %p155 = por %p153, %p154
    %s156 = ssub.s32 %s19, %s31
    %p157 = scmp.eq.s32.totalorder %s156, 0
    %s159 = sadd.s32 %s158, 1
    %s160 = scalar_select %p157, %s158, %s159
    %p163 = pneg %p157
    %p164 = scmp.eq.s32.totalorder %s12, 1
    %p165 = por %p163, %p164
    %p166 = scmp.ne.s32.totalorder %s158, %s161
    %p167 = scmp.eq.s32.totalorder %s12, 0
    %p168 = por %p166, %p167
    %p169 = scmp.ne.s32.totalorder %s158, %s161
    %p170 = scmp.eq.s32.totalorder %s17, 1
    %p171 = por %p169, %p170
    %p172 = scmp.ne.s32.totalorder %s161, %s162
    %p173 = scmp.eq.s32.totalorder %s17, 0
    %p174 = por %p172, %p173
    %p175 = scmp.ne.s32.totalorder %s161, %s162
    %p176 = scmp.eq.s32.totalorder %s18, 1
    %p177 = por %p175, %p176
    %p179 = scmp.ne.s32.totalorder %s162, %s178
    %p180 = scmp.eq.s32.totalorder %s18, 0
    %p181 = por %p179, %p180
    %p182 = scmp.le.s32.totalorder 1, %s12
    %p183 = scmp.lt.s32.totalorder %s12, 3
    %p184 = pnand %p182, %p183
    %p185 = pneg %p184
    // Predicated region
    $region9: #{_fused_forward.1} parent=5 // pred_check
      _
    $region10: #{_fused_forward.1} parent=5 // pred_check_branch
      %187 = sbr.rel (%p184) target = $region12
    $region11: #{_fused_forward.1} parent=5 // pred_region
      %s188 = ssub.s32 %s12, 1
      // Predicated region
      $region13: #{_fused_forward.1} parent=11 // pred_check
        %p189 = pneg %p73
      $region14: #{_fused_forward.1} parent=11 // pred_check_branch
        %191 = sbr.rel (%p189) target = $region16
      $region15: #{_fused_forward.1} parent=11 // pred_region
        _
      $region16: #{_fused_forward.1} parent=11 // pred_fallthru
        _
      // Predicated region
      $region17: #{_fused_forward.1} parent=11 // pred_check
        %p192 = pneg %p94
      $region18: #{_fused_forward.1} parent=11 // pred_check_branch
        %194 = sbr.rel (%p192) target = $region20
      $region19: #{_fused_forward.1} parent=11 // pred_region
        _
      $region20: #{_fused_forward.1} parent=11 // pred_fallthru
        _
    $region12: #{_fused_forward.1} parent=5 // pred_fallthru
      _
    %p195 = scmp.lt.s32.totalorder %s12, 2
    // Predicated region
    $region21: #{_fused_forward.1} parent=5 // pred_check
      %p196 = pneg %p195
    $region22: #{_fused_forward.1} parent=5 // pred_check_branch
      %198 = sbr.rel (%p196) target = $region24
    $region23: #{_fused_forward.1} parent=5 // pred_region
      // Predicated region
      $region25: #{_fused_forward.1} parent=23 // pred_check
        %p199 = pneg %p46
      $region26: #{_fused_forward.1} parent=23 // pred_check_branch
        %201 = sbr.rel (%p199) target = $region28
      $region27: #{_fused_forward.1} parent=23 // pred_region
        %s202 = sadd.s32 %s19, %s20
        %p203 = scmp.lt.s32.totalorder %s202, 1
        %s204 = scalar_select %p203, %s202, 1
        %s205 = smul.addr %s204, 8
        %s206 = scalar_lea.vmem %s0, %s205
        %s207 = sadd.s32 %s19, %s20
      $region28: #{_fused_forward.1} parent=23 // pred_fallthru
        _
    $region24: #{_fused_forward.1} parent=5 // pred_fallthru
      _
    %p208 = scmp.le.s32.totalorder 1, %s12
    %p209 = scmp.lt.s32.totalorder %s12, 3
    %p210 = pnand %p208, %p209
    %p211 = pneg %p210
    // Predicated region
    $region29: #{_fused_forward.1} parent=5 // pred_check
      _
    $region30: #{_fused_forward.1} parent=5 // pred_check_branch
      %213 = sbr.rel (%p210) target = $region32
    $region31: #{_fused_forward.1} parent=5 // pred_region
      %s214 = ssub.s32 %s12, 1
      %s215 = sadd.s32 %s21, %s22
      %p216 = scmp.lt.s32.totalorder %s215, 1
      %s217 = scalar_select %p216, %s215, 1
      %s218 = smul.addr %s217, 8
      %s219 = scalar_lea.vmem %s0, %s218
      %p220 = pneg %p52
      %p221 = pneg %p49
      %p222 = pneg %p73
      %p223 = pneg %p70
      %p224 = pneg %p94
      %p225 = pneg %p91
      %p226 = pneg %p122
      %p227 = pneg %p119
      %s228 = sadd.s32 %s21, %s22
      %p229 = scmp.lt.s32.totalorder %s228, 1
      %s230 = scalar_select %p229, %s228, 1
      %s231 = smul.addr %s230, 8
      %s232 = scalar_lea.vmem %s3, %s231
      %p233 = pneg %p148
      %p234 = pneg %p145
      %p235 = scmp.lt.s32.totalorder %s21, 1
      %s236 = scalar_select %p235, %s21, 1
      %s237 = smul.addr %s236, 8
      %s238 = scalar_lea.vmem %s4, %s237
      %p239 = pneg %p174
      %p240 = pneg %p171
      %p241 = scmp.lt.s32.totalorder %s21, 1
      %s242 = scalar_select %p241, %s21, 1
      %s243 = smul.addr %s242, 8
      %s244 = scalar_lea.vmem %s5, %s243
      %s245 = sadd.s32 %s21, %s22
      %p246 = scmp.lt.s32.totalorder %s245, 1
      %s247 = scalar_select %p246, %s245, 1
      %s248 = smul.addr %s247, 8
      %s249 = scalar_lea.vmem %s0, %s248
      %s250 = sadd.s32 %s21, %s22
      %s251 = sadd.s32 %s21, %s22
      %p252 = scmp.lt.s32.totalorder %s251, 1
      %s253 = scalar_select %p252, %s251, 1
      %s254 = smul.addr %s253, 8
      %s255 = scalar_lea.vmem %s3, %s254
      %s256 = sadd.s32 %s21, %s22
      %p257 = scmp.lt.s32.totalorder %s21, 1
      %s258 = scalar_select %p257, %s21, 1
      %s259 = smul.addr %s258, 8
      %s260 = scalar_lea.vmem %s4, %s259
      %p261 = scmp.lt.s32.totalorder %s21, 1
      %s262 = scalar_select %p261, %s21, 1
      %s263 = smul.addr %s262, 8
      %s264 = scalar_lea.vmem %s5, %s263
      %v265 = vld [vmem:[%s249] sm:$0xff]
      %v266 = vld [vmem:[%s1] sm:$0x1]
      %v267 = vld [vmem:[%s2] sm:$0x1]
      %v269 = vlaneseq
      %v270 = vshrl.u32 %v269, 7
      %v271 = vsub.s32 0, %v270
      %v272 = vrot.slane %v266, %v271
      %v274 = vsub.f32 %v265, %v272
      %v275 = vadd.f32 %v267, 1e-05
      %v276 = vrsqrt.pop %v275
      %v278 = vlaneseq
      %v279 = vshrl.u32 %v278, 7
      %v280 = vsub.s32 0, %v279
      %v281 = vrot.slane %v276, %v280
      %v283 = vmul.f32 %v274, %v281
      %v284 = vmax.f32 %v283, -5.0
      %v285 = vmin.f32 %v284, 5.0
      %286 = vst [vmem:[%s255] sm:$0xff] %v285
      %v287 = vadd.f32 %v274, 0.0
      %v288 = vmul.f32 %v274, %v274
      %v289 = vadd.f32 %v288, 0.0
      %p290 = scmp.eq.s32.totalorder %s22, 0
      // Predicated region
      $region33: #{_fused_forward.1} parent=31 // pred_check
        %p291 = pneg %p290
      $region34: #{_fused_forward.1} parent=31 // pred_check_branch
        %293 = sbr.rel (%p291) target = $region36
      $region35: #{_fused_forward.1} parent=31 // pred_region
        %294 = vst [vmem:[%s260] sm:$0xff] 0.0
        %295 = vst [vmem:[%s264] sm:$0xff] 0.0
      $region36: #{_fused_forward.1} parent=31 // pred_fallthru
        _
      %v296 = vld [vmem:[%s260] sm:$0xff]
      %v297 = vadd.f32 %v296, %v287
      %298 = vst [vmem:[%s260] sm:$0xff] %v297
      %v299 = vld [vmem:[%s264] sm:$0xff]
      %v300 = vadd.f32 %v299, %v289
      %301 = vst [vmem:[%s264] sm:$0xff] %v300
      %s302 = sadd.s32 %s21, %s22
      %p303 = scmp.lt.s32.totalorder %s302, 1
      %s304 = scalar_select %p303, %s302, 1
      %s305 = smul.addr %s304, 8
      %s306 = scalar_lea.vmem %s3, %s305
      %p307 = scmp.lt.s32.totalorder %s21, 1
      %s308 = scalar_select %p307, %s21, 1
      %s309 = smul.addr %s308, 8
      %s310 = scalar_lea.vmem %s4, %s309
      %p311 = scmp.lt.s32.totalorder %s21, 1
      %s312 = scalar_select %p311, %s21, 1
      %s313 = smul.addr %s312, 8
      %s314 = scalar_lea.vmem %s5, %s313
      // Predicated region
      $region37: #{_fused_forward.1} parent=31 // pred_check
        %p315 = pneg %p119
      $region38: #{_fused_forward.1} parent=31 // pred_check_branch
        %317 = sbr.rel (%p315) target = $region40
      $region39: #{_fused_forward.1} parent=31 // pred_region
        %s318 = sadd.s32 %s21, %s22
      $region40: #{_fused_forward.1} parent=31 // pred_fallthru
        _
      // Predicated region
      $region41: #{_fused_forward.1} parent=31 // pred_check
        %p319 = pneg %p145
      $region42: #{_fused_forward.1} parent=31 // pred_check_branch
        %321 = sbr.rel (%p319) target = $region44
      $region43: #{_fused_forward.1} parent=31 // pred_region
        _
      $region44: #{_fused_forward.1} parent=31 // pred_fallthru
        _
      // Predicated region
      $region45: #{_fused_forward.1} parent=31 // pred_check
        %p322 = pneg %p171
      $region46: #{_fused_forward.1} parent=31 // pred_check_branch
        %324 = sbr.rel (%p322) target = $region48
      $region47: #{_fused_forward.1} parent=31 // pred_region
        _
      $region48: #{_fused_forward.1} parent=31 // pred_fallthru
        _
    $region32: #{_fused_forward.1} parent=5 // pred_fallthru
      _
    %p325 = scmp.le.s32.totalorder 2, %s12
    // Predicated region
    $region49: #{_fused_forward.1} parent=5 // pred_check
      %p326 = pneg %p325
    $region50: #{_fused_forward.1} parent=5 // pred_check_branch
      %328 = sbr.rel (%p326) target = $region52
    $region51: #{_fused_forward.1} parent=5 // pred_region
      %s329 = ssub.s32 %s12, 2
      // Predicated region
      $region53: #{_fused_forward.1} parent=51 // pred_check
        %p330 = pneg %p125
      $region54: #{_fused_forward.1} parent=51 // pred_check_branch
        %332 = sbr.rel (%p330) target = $region56
      $region55: #{_fused_forward.1} parent=51 // pred_region
        %s333 = sadd.s32 %s23, %s24
        %p334 = scmp.lt.s32.totalorder %s333, 1
        %s335 = scalar_select %p334, %s333, 1
        %s336 = smul.addr %s335, 8
        %s337 = scalar_lea.vmem %s3, %s336
      $region56: #{_fused_forward.1} parent=51 // pred_fallthru
        _
      // Predicated region
      $region57: #{_fused_forward.1} parent=51 // pred_check
        %p338 = pneg %p151
      $region58: #{_fused_forward.1} parent=51 // pred_check_branch
        %340 = sbr.rel (%p338) target = $region60
      $region59: #{_fused_forward.1} parent=51 // pred_region
        %p341 = scmp.lt.s32.totalorder %s23, 1
        %s342 = scalar_select %p341, %s23, 1
        %s343 = smul.addr %s342, 8
        %s344 = scalar_lea.vmem %s4, %s343
      $region60: #{_fused_forward.1} parent=51 // pred_fallthru
        _
      // Predicated region
      $region61: #{_fused_forward.1} parent=51 // pred_check
        %p345 = pneg %p177
      $region62: #{_fused_forward.1} parent=51 // pred_check_branch
        %347 = sbr.rel (%p345) target = $region64
      $region63: #{_fused_forward.1} parent=51 // pred_region
        %p348 = scmp.lt.s32.totalorder %s23, 1
        %s349 = scalar_select %p348, %s23, 1
        %s350 = smul.addr %s349, 8
        %s351 = scalar_lea.vmem %s5, %s350
      $region64: #{_fused_forward.1} parent=51 // pred_fallthru
        _
    $region52: #{_fused_forward.1} parent=5 // pred_fallthru
      _
  $region6: #{_fused_forward.1} parent=0 // loop_footer
    %s16 = sadd.s32 1, %s12
  $region7: #{_fused_forward.1} parent=0 // loop_footer_branch
    %11 = sbr.rel target = $region3
  $region8: #{_fused_forward.1} parent=0 // loop_exit
    _

</llo_original>
